<compile_context>
chip_gen: v6e
topology: v6e:2x2x1
jax: 0.10.0
libtpu: 0.0.40
codegen_flags: <defaults>
</compile_context>

<pallas_src>
import functools
import math

import jax
import jax.numpy as jnp
from jax.experimental import pallas as pl
from jax.experimental.pallas import tpu as pltpu


# ----------------------------------------------------------------------------
# Fused Pallas kernel: [Linear -> GELU] * (L-1)  ->  Linear   (transposed layout)
# ----------------------------------------------------------------------------
def _fused_head_kernel(*refs, num_layers: int):
    # refs = (xT_ref, W_0..W_{L-1}, b_0..b_{L-1}, oT_ref)
    xT_ref = refs[0]
    w_refs = refs[1:1 + num_layers]
    b_refs = refs[1 + num_layers:1 + 2 * num_layers]
    oT_ref = refs[1 + 2 * num_layers]

    inv_sqrt2 = jnp.float32(1.0 / math.sqrt(2.0))

    # h is (features, TB): batch on the lane axis.  Keep the chain in f32.
    h = xT_ref[...]
    for l in range(num_layers):
        w = w_refs[l][...]                          # (out_l, in_l), torch-native
        b = b_refs[l][...].astype(jnp.float32)      # (out_l, 1), lane-broadcast
        # MXU matmul, f32 accumulation: y^T = W @ h^T + b
        y = jnp.dot(w, h, preferred_element_type=jnp.float32) + b
        if l < num_layers - 1:
            # Exact (erf-based) GELU, matching torch.nn.GELU() default.
            y = 0.5 * y * (1.0 + jax.lax.erf(y * inv_sqrt2))
        h = y                                       # stay float32 (no downcast)

    oT_ref[...] = h.astype(oT_ref.dtype)            # lane-dense store


def _round_up(x: int, m: int) -> int:
    return ((x + m - 1) // m) * m


def _choose_batch_tile(B: int, batch_tile: int) -> int:
    """Batch lives on the lane axis -> tiles must be multiples of 128 (or = B)."""
    bt = max(128, (int(batch_tile) // 128) * 128)   # defensive rounding
    if B < 512:
        # Tiny batch: one full-array block (block dim == full dim is legal).
        return B
    # Amortize the ~0.35us/step overhead with big tiles, but keep the grid at
    # >= 2 "parallel" steps so v7x can shard across its 2 TensorCores.
    return min(bt, _round_up(pl.cdiv(B, 2), 128))


def classification_head_pallas(x, params, *, batch_tile: int = 4096):
    """Fused forward of the whole head in a single pallas_call.

    x:      (B, embed_dim)
    params: list of (W, b) with W in PyTorch-native (out_features, in_features)
            layout and b of shape (out_features, 1).
    """
    B, Fin = x.shape
    num_layers = len(params)
    num_classes = params[-1][0].shape[0]

    TB = _choose_batch_tile(B, batch_tile)
    grid = (pl.cdiv(B, TB),)

    # Feed x transposed: (Fin, B) with batch on the lane axis.
    xT = x.T

    # x^T tile marches along the batch (lane) axis; weights/biases are
    # full-array blocks that stay VMEM-resident across the whole grid.
    in_specs = [pl.BlockSpec((Fin, TB), lambda i: (0, i))]
    for (W, _b) in params:
        fo, fi = W.shape
        in_specs.append(pl.BlockSpec((fo, fi), lambda i: (0, 0)))
    for (_W, b) in params:
        fo = b.shape[0]
        in_specs.append(pl.BlockSpec((fo, 1), lambda i: (0, 0)))

    out_specs = pl.BlockSpec((num_classes, TB), lambda i: (0, i))

    kernel = functools.partial(_fused_head_kernel, num_layers=num_layers)
    flat_inputs = [xT] + [W for (W, _b) in params] + [b for (_W, b) in params]

    outT = pl.pallas_call(
        kernel,
        out_shape=jax.ShapeDtypeStruct((num_classes, B), x.dtype),
        grid=grid,
        in_specs=in_specs,
        out_specs=out_specs,
        compiler_params=pltpu.CompilerParams(
            # Batch axis is independent work -> shardable across TCs (v7x).
            dimension_semantics=("parallel",),
        ),
    )(*flat_inputs)

    # Tiny (num_classes, B) -> (B, num_classes) transpose in the wrapper.
    return outT.T


# ----------------------------------------------------------------------------
# Parameter construction (same shapes/layer structure as the PyTorch module)
# ----------------------------------------------------------------------------
def make_classification_head_params(key, embed_dim: int, num_classes: int,
                                     dtype=jnp.float32):
    """Returns list of (W, b): W is (out, in) (torch-native), b is (out, 1)."""
    num_hidden_layers = math.ceil((num_classes - 1) / 2)
    hidden_size = embed_dim // 2

    params = []
    in_features = embed_dim
    for _ in range(num_hidden_layers):
        key, kw, kb = jax.random.split(key, 3)
        bound = 1.0 / math.sqrt(in_features)  # torch.nn.Linear-style init scale
        W = jax.random.uniform(kw, (hidden_size, in_features),
                               minval=-bound, maxval=bound, dtype=jnp.float32)
        b = jax.random.uniform(kb, (hidden_size, 1),
                               minval=-bound, maxval=bound, dtype=jnp.float32)
        params.append((W.astype(dtype), b.astype(dtype)))
        in_features = hidden_size
        hidden_size = hidden_size // 2

    key, kw, kb = jax.random.split(key, 3)
    bound = 1.0 / math.sqrt(in_features)
    W = jax.random.uniform(kw, (num_classes, in_features),
                           minval=-bound, maxval=bound, dtype=jnp.float32)
    b = jax.random.uniform(kb, (num_classes, 1),
                           minval=-bound, maxval=bound, dtype=jnp.float32)
    params.append((W.astype(dtype), b.astype(dtype)))
    return params


def classification_head_reference(x, params):
    """Plain-JAX reference (eval mode: dropout = identity)."""
    h = x
    num_layers = len(params)
    for l, (W, b) in enumerate(params):
        h = h @ W.T + b[:, 0]
        if l < num_layers - 1:
            h = 0.5 * h * (1.0 + jax.lax.erf(h / jnp.sqrt(2.0)))
    return h


# ----------------------------------------------------------------------------
if __name__ == "__main__":
    # Shapes consistent with the module:
    #   embed_dim=32, num_classes=4 -> num_hidden_layers = ceil(3/2) = 2
    #   Linear(32->16)+GELU(+Dropout), Linear(16->8)+GELU(+Dropout), Linear(8->4)
    embed_dim = 32
    num_classes = 4

    key = jax.random.PRNGKey(0)
    key, kx, kp = jax.random.split(key, 3)
    params = make_classification_head_params(kp, embed_dim, num_classes)

    # Tolerance note: kernel (W @ h^T) and reference (h @ W^T) contract in
    # different orders and the MXU's default f32 precision may differ slightly
    # from XLA's, so compare with a modest (but bug-catching) tolerance.
    TOL = dict(atol=2e-3, rtol=2e-3)

    # Small case: single full-array batch block.
    batch = 2
    x_small = jax.random.normal(kx, (batch, embed_dim), dtype=jnp.float32)
    out_small = jax.block_until_ready(classification_head_pallas(x_small, params))
    ref_small = classification_head_reference(x_small, params)
    assert out_small.shape == (batch, num_classes), out_small.shape
    assert jnp.allclose(out_small, ref_small, **TOL)

    # Larger batch: exercises the tiled/pipelined batch grid (2 x 512-row tiles).
    key, kx2 = jax.random.split(key)
    x_big = jax.random.normal(kx2, (1024, embed_dim), dtype=jnp.float32)
    out_big = jax.block_until_ready(classification_head_pallas(x_big, params))
    ref_big = classification_head_reference(x_big, params)
    assert out_big.shape == (1024, num_classes), out_big.shape
    assert jnp.allclose(out_big, ref_big, **TOL)

    # Ragged batch: B not a multiple of the tile; last block writes are masked.
    key, kx3 = jax.random.split(key)
    x_ragged = jax.random.normal(kx3, (1000, embed_dim), dtype=jnp.float32)
    out_ragged = jax.block_until_ready(classification_head_pallas(x_ragged, params))
    ref_ragged = classification_head_reference(x_ragged, params)
    assert out_ragged.shape == (1000, num_classes), out_ragged.shape
    assert jnp.allclose(out_ragged, ref_ragged, **TOL)

    print("KERNEL_OK")
</pallas_src>

<mosaic_0001>
module attributes {stable_mosaic.version = 11 : i64} {
  func.func @_fused_head_kernel(%arg0: i32, %arg1: memref<32x2xf32, #tpu.memory_space<vmem>>, %arg2: memref<16x32xf32, #tpu.memory_space<vmem>>, %arg3: memref<8x16xf32, #tpu.memory_space<vmem>>, %arg4: memref<4x8xf32, #tpu.memory_space<vmem>>, %arg5: memref<16x1xf32, #tpu.memory_space<vmem>>, %arg6: memref<8x1xf32, #tpu.memory_space<vmem>>, %arg7: memref<4x1xf32, #tpu.memory_space<vmem>>, %arg8: memref<4x2xf32, #tpu.memory_space<vmem>>) attributes {dimension_semantics = [#tpu.dimension_semantics<parallel>], iteration_bounds = array<i64: 1>, scalar_prefetch = 0 : i64, scratch_operands = 0 : i64, tpu.core_type = #tpu.core_type<tc>, window_params = [{transform_indices = @transform_0, window_bounds = array<i64: 32, 2>}, {pipeline_mode = #tpu.pipeline_mode<synchronous>, transform_indices = @transform_1, window_bounds = array<i64: 16, 32>}, {pipeline_mode = #tpu.pipeline_mode<synchronous>, transform_indices = @transform_2, window_bounds = array<i64: 8, 16>}, {pipeline_mode = #tpu.pipeline_mode<synchronous>, transform_indices = @transform_3, window_bounds = array<i64: 4, 8>}, {pipeline_mode = #tpu.pipeline_mode<synchronous>, transform_indices = @transform_4, window_bounds = array<i64: 16, 1>}, {pipeline_mode = #tpu.pipeline_mode<synchronous>, transform_indices = @transform_5, window_bounds = array<i64: 8, 1>}, {pipeline_mode = #tpu.pipeline_mode<synchronous>, transform_indices = @transform_6, window_bounds = array<i64: 4, 1>}, {transform_indices = @transform_7, window_bounds = array<i64: 4, 2>}]} {
    %c0 = arith.constant 0 : index
    %c0_0 = arith.constant 0 : index
    %0 = vector.load %arg1[%c0, %c0_0] : memref<32x2xf32, #tpu.memory_space<vmem>>, vector<32x2xf32>
    %c0_1 = arith.constant 0 : index
    %c0_2 = arith.constant 0 : index
    %1 = vector.load %arg2[%c0_1, %c0_2] : memref<16x32xf32, #tpu.memory_space<vmem>>, vector<16x32xf32>
    %c0_3 = arith.constant 0 : index
    %c0_4 = arith.constant 0 : index
    %2 = vector.load %arg5[%c0_3, %c0_4] : memref<16x1xf32, #tpu.memory_space<vmem>>, vector<16x1xf32>
    %cst = arith.constant dense<0.000000e+00> : vector<16x2xf32>
    %3 = tpu.matmul %1, %0, %cst {dimension_numbers = #tpu.dot_dimension_numbers<[1], [0], [0], [1], [0, 0, 1, 1], [], []>} : vector<16x32xf32>, vector<32x2xf32>, vector<16x2xf32> -> vector<16x2xf32>
    %4 = vector.broadcast %2 : vector<16x1xf32> to vector<16x2xf32>
    %5 = arith.addf %3, %4 : vector<16x2xf32>
    %cst_5 = arith.constant 5.000000e-01 : f32
    %6 = vector.broadcast %cst_5 : f32 to vector<16x2xf32>
    %7 = arith.mulf %6, %5 : vector<16x2xf32>
    %cst_6 = arith.constant 0.707106769 : f32
    %8 = vector.broadcast %cst_6 : f32 to vector<16x2xf32>
    %9 = arith.mulf %5, %8 : vector<16x2xf32>
    %10 = math.erf %9 : vector<16x2xf32>
    %cst_7 = arith.constant 1.000000e+00 : f32
    %11 = vector.broadcast %cst_7 : f32 to vector<16x2xf32>
    %12 = arith.addf %11, %10 : vector<16x2xf32>
    %13 = arith.mulf %7, %12 : vector<16x2xf32>
    %c0_8 = arith.constant 0 : index
    %c0_9 = arith.constant 0 : index
    %14 = vector.load %arg3[%c0_8, %c0_9] : memref<8x16xf32, #tpu.memory_space<vmem>>, vector<8x16xf32>
    %c0_10 = arith.constant 0 : index
    %c0_11 = arith.constant 0 : index
    %15 = vector.load %arg6[%c0_10, %c0_11] : memref<8x1xf32, #tpu.memory_space<vmem>>, vector<8x1xf32>
    %cst_12 = arith.constant dense<0.000000e+00> : vector<8x2xf32>
    %16 = tpu.matmul %14, %13, %cst_12 {dimension_numbers = #tpu.dot_dimension_numbers<[1], [0], [0], [1], [0, 0, 1, 1], [], []>} : vector<8x16xf32>, vector<16x2xf32>, vector<8x2xf32> -> vector<8x2xf32>
    %17 = vector.broadcast %15 : vector<8x1xf32> to vector<8x2xf32>
    %18 = arith.addf %16, %17 : vector<8x2xf32>
    %cst_13 = arith.constant 5.000000e-01 : f32
    %19 = vector.broadcast %cst_13 : f32 to vector<8x2xf32>
    %20 = arith.mulf %19, %18 : vector<8x2xf32>
    %cst_14 = arith.constant 0.707106769 : f32
    %21 = vector.broadcast %cst_14 : f32 to vector<8x2xf32>
    %22 = arith.mulf %18, %21 : vector<8x2xf32>
    %23 = math.erf %22 : vector<8x2xf32>
    %cst_15 = arith.constant 1.000000e+00 : f32
    %24 = vector.broadcast %cst_15 : f32 to vector<8x2xf32>
    %25 = arith.addf %24, %23 : vector<8x2xf32>
    %26 = arith.mulf %20, %25 : vector<8x2xf32>
    %c0_16 = arith.constant 0 : index
    %c0_17 = arith.constant 0 : index
    %27 = vector.load %arg4[%c0_16, %c0_17] : memref<4x8xf32, #tpu.memory_space<vmem>>, vector<4x8xf32>
    %c0_18 = arith.constant 0 : index
    %c0_19 = arith.constant 0 : index
    %28 = vector.load %arg7[%c0_18, %c0_19] : memref<4x1xf32, #tpu.memory_space<vmem>>, vector<4x1xf32>
    %cst_20 = arith.constant dense<0.000000e+00> : vector<4x2xf32>
    %29 = tpu.matmul %27, %26, %cst_20 {dimension_numbers = #tpu.dot_dimension_numbers<[1], [0], [0], [1], [0, 0, 1, 1], [], []>} : vector<4x8xf32>, vector<8x2xf32>, vector<4x2xf32> -> vector<4x2xf32>
    %30 = vector.broadcast %28 : vector<4x1xf32> to vector<4x2xf32>
    %31 = arith.addf %29, %30 : vector<4x2xf32>
    %c0_21 = arith.constant 0 : index
    %c0_22 = arith.constant 0 : index
    %32 = vector.load %arg8[%c0_21, %c0_22] : memref<4x2xf32, #tpu.memory_space<vmem>>, vector<4x2xf32>
    tpu.vector_store %arg8[%c0_21, %c0_22], %31 {strides = array<i32>} : memref<4x2xf32, #tpu.memory_space<vmem>>, vector<4x2xf32>,
    return
  }
  func.func @transform_0(%arg0: i32) -> (i32, i32) {
    %c0_i32 = arith.constant 0 : i32
    %c0_i32_0 = arith.constant 0 : i32
    return %c0_i32, %arg0 : i32, i32
  }
  func.func @transform_1(%arg0: i32) -> (i32, i32) {
    %c0_i32 = arith.constant 0 : i32
    %c0_i32_0 = arith.constant 0 : i32
    %c0_i32_1 = arith.constant 0 : i32
    return %c0_i32, %c0_i32_0 : i32, i32
  }
  func.func @transform_2(%arg0: i32) -> (i32, i32) {
    %c0_i32 = arith.constant 0 : i32
    %c0_i32_0 = arith.constant 0 : i32
    %c0_i32_1 = arith.constant 0 : i32
    return %c0_i32, %c0_i32_0 : i32, i32
  }
  func.func @transform_3(%arg0: i32) -> (i32, i32) {
    %c0_i32 = arith.constant 0 : i32
    %c0_i32_0 = arith.constant 0 : i32
    %c0_i32_1 = arith.constant 0 : i32
    return %c0_i32, %c0_i32_0 : i32, i32
  }
  func.func @transform_4(%arg0: i32) -> (i32, i32) {
    %c0_i32 = arith.constant 0 : i32
    %c0_i32_0 = arith.constant 0 : i32
    %c0_i32_1 = arith.constant 0 : i32
    return %c0_i32, %c0_i32_0 : i32, i32
  }
  func.func @transform_5(%arg0: i32) -> (i32, i32) {
    %c0_i32 = arith.constant 0 : i32
    %c0_i32_0 = arith.constant 0 : i32
    %c0_i32_1 = arith.constant 0 : i32
    return %c0_i32, %c0_i32_0 : i32, i32
  }
  func.func @transform_6(%arg0: i32) -> (i32, i32) {
    %c0_i32 = arith.constant 0 : i32
    %c0_i32_0 = arith.constant 0 : i32
    %c0_i32_1 = arith.constant 0 : i32
    return %c0_i32, %c0_i32_0 : i32, i32
  }
  func.func @transform_7(%arg0: i32) -> (i32, i32) {
    %c0_i32 = arith.constant 0 : i32
    %c0_i32_0 = arith.constant 0 : i32
    return %c0_i32, %arg0 : i32, i32
  }
}

</mosaic_0001>

<llo_original>
// kernel: tpu_custom_call.1
$region0: #{tpu_custom_call.1}
  #allocation0 [shape = 'u32[]', space=smem, size = 0x4, offset = 0x4, fixed_abs, tag = 'smem constant byte address 0x4 - core index']
  #allocation1 [shape = 'u32[144,128]{1,0:T(1,128)}', space=vmem, size = 0x12000, scoped, tag = 'internal scratch']
  %s0 = inlined_call_operand.vmem [shape: f32[32,2], index: 0, kind: input, shape index: {}]
  %s1 = inlined_call_operand.vmem [shape: f32[16,32], index: 1, kind: input, shape index: {}]
  %s2 = inlined_call_operand.vmem [shape: f32[8,16], index: 2, kind: input, shape index: {}]
  %s3 = inlined_call_operand.vmem [shape: f32[4,8], index: 3, kind: input, shape index: {}]
  %s4 = inlined_call_operand.vmem [shape: f32[16,1], index: 4, kind: input, shape index: {}]
  %s5 = inlined_call_operand.vmem [shape: f32[8,1], index: 5, kind: input, shape index: {}]
  %s6 = inlined_call_operand.vmem [shape: f32[4,1], index: 6, kind: input, shape index: {}]
  %s7 = inlined_call_operand.vmem [shape: f32[4,2], index: 7, kind: output, shape index: {}]
  %s8 = sld [smem:[#allocation0]]
  $region38: #{tpu_custom_call.1} parent=0
    _
  %s10 = ssub.s32 1, %s8
  %s11 = scalar_select 0, %s10, %s8
  // Predicated region
  $region2: #{tpu_custom_call.1} parent=0 // pred_check
    _
  $region3: #{tpu_custom_call.1} parent=0 // pred_check_branch
    %13 = sbr.rel (0) target = $region5
  $region4: #{tpu_custom_call.1} parent=0 // pred_region
    _
  $region5: #{tpu_custom_call.1} parent=0 // pred_fallthru
    _
  // Predicated region
  $region6: #{tpu_custom_call.1} parent=0 // pred_check
    _
  $region7: #{tpu_custom_call.1} parent=0 // pred_check_branch
    %15 = sbr.rel (0) target = $region9
  $region8: #{tpu_custom_call.1} parent=0 // pred_region
    _
  $region9: #{tpu_custom_call.1} parent=0 // pred_fallthru
    _
  // Predicated region
  $region10: #{tpu_custom_call.1} parent=0 // pred_check
    _
  $region11: #{tpu_custom_call.1} parent=0 // pred_check_branch
    %17 = sbr.rel (0) target = $region13
  $region12: #{tpu_custom_call.1} parent=0 // pred_region
    _
  $region13: #{tpu_custom_call.1} parent=0 // pred_fallthru
    _
  // Predicated region
  $region14: #{tpu_custom_call.1} parent=0 // pred_check
    _
  $region15: #{tpu_custom_call.1} parent=0 // pred_check_branch
    %19 = sbr.rel (0) target = $region17
  $region16: #{tpu_custom_call.1} parent=0 // pred_region
    _
  $region17: #{tpu_custom_call.1} parent=0 // pred_fallthru
    _
  // Predicated region
  $region18: #{tpu_custom_call.1} parent=0 // pred_check
    _
  $region19: #{tpu_custom_call.1} parent=0 // pred_check_branch
    %21 = sbr.rel (0) target = $region21
  $region20: #{tpu_custom_call.1} parent=0 // pred_region
    _
  $region21: #{tpu_custom_call.1} parent=0 // pred_fallthru
    _
  // Predicated region
  $region22: #{tpu_custom_call.1} parent=0 // pred_check
    _
  $region23: #{tpu_custom_call.1} parent=0 // pred_check_branch
    %23 = sbr.rel (0) target = $region25
  $region24: #{tpu_custom_call.1} parent=0 // pred_region
    _
  $region25: #{tpu_custom_call.1} parent=0 // pred_fallthru
    _
  // Predicated region
  $region26: #{tpu_custom_call.1} parent=0 // pred_check
    _
  $region27: #{tpu_custom_call.1} parent=0 // pred_check_branch
    %25 = sbr.rel (0) target = $region29
  $region28: #{tpu_custom_call.1} parent=0 // pred_region
    _
  $region29: #{tpu_custom_call.1} parent=0 // pred_fallthru
    _
  %v26 = vld [vmem:[%s0] sm:$0xff]
  %v27 = vld [vmem:[%s0 + $0x8] sm:$0xff]
  %v28 = vld [vmem:[%s0 + $0x10] sm:$0xff]
  %v29 = vld [vmem:[%s0 + $0x18] sm:$0xff]
  %v30 = vld [vmem:[%s1] sm:$0xff]
  %v31 = vld [vmem:[%s1 + $0x8] sm:$0xff]
  %v32 = vld [vmem:[%s4] sm:$0xff]
  %v33 = vld [vmem:[%s4 + $0x8] sm:$0xff]
  %35 = vset.pattern.permute.xlu0 0
  %36 = vperm.xlu0 %35, %v32
  %v37 = vpop.permute.xlu0 %36
  %40 = vset.pattern.permute.xlu0 0
  %41 = vperm.xlu0 %40, %v33
  %v42 = vpop.permute.xlu0 %41
  %vm44 = vcmask 261120
  %v46 = vsel %vm44, %v30, 0
  %v49 = vsel %vm44, %v31, 0
  %51 = vmatprep.subr.mxu0 0.0
  %52 = vmatpush1.msra.mxu0 0.0
  %53 = vmatprep.subr.mxu0 0.0
  %54 = vmatpush1.msra.mxu0 0.0
  %55 = vmatprep.subr.mxu0 0.0
  %56 = vmatpush1.msra.mxu0 0.0
  %57 = vmatprep.subr.mxu0 0.0
  %58 = vmatpush1.msra.mxu0 0.0
  %59 = vmatprep.subr.mxu0 0.0
  %60 = vmatpush1.msra.mxu0 0.0
  %61 = vmatprep.subr.mxu0 0.0
  %62 = vmatpush1.msra.mxu0 0.0
  %63 = vmatprep.subr.mxu0 0.0
  %64 = vmatpush1.msra.mxu0 0.0
  %65 = vmatprep.subr.mxu0 0.0
  %66 = vmatpush1.msra.mxu0 0.0
  %67 = vmatprep.subr.mxu0 0.0
  %68 = vmatpush1.msra.mxu0 0.0
  %69 = vmatprep.subr.mxu0 0.0
  %70 = vmatpush1.msra.mxu0 0.0
  %71 = vmatprep.subr.mxu0 0.0
  %72 = vmatpush1.msra.mxu0 0.0
  %73 = vmatprep.subr.mxu0 0.0
  %74 = vmatpush1.msra.mxu0 0.0
  %75 = vmatprep.subr.mxu0 0.0
  %76 = vmatpush1.msra.mxu0 %v29
  %77 = vmatprep.subr.mxu0 0.0
  %78 = vmatpush1.msra.mxu0 %v28
  %79 = vmatprep.subr.mxu0 0.0
  %80 = vmatpush1.msra.mxu0 %v27
  %81 = vmatprep.subr.mxu0 0.0
  %82 = vmatpush1.msra.mxu0 %v26
  %83 = vmatprep.subr.mxu0 0.0
  %84 = vmatpush2.msra.mxu0 0.0
  %85 = vmatprep.subr.mxu0 0.0
  %86 = vmatpush2.msra.mxu0 0.0
  %87 = vmatprep.subr.mxu0 0.0
  %88 = vmatpush2.msra.mxu0 0.0
  %89 = vmatprep.subr.mxu0 0.0
  %90 = vmatpush2.msra.mxu0 0.0
  %91 = vmatprep.subr.mxu0 0.0
  %92 = vmatpush2.msra.mxu0 0.0
  %93 = vmatprep.subr.mxu0 0.0
  %94 = vmatpush2.msra.mxu0 0.0
  %95 = vmatprep.subr.mxu0 0.0
  %96 = vmatpush2.msra.mxu0 0.0
  %97 = vmatprep.subr.mxu0 0.0
  %98 = vmatpush2.msra.mxu0 0.0
  %99 = vmatprep.subr.mxu0 0.0
  %100 = vmatpush2.msra.mxu0 0.0
  %101 = vmatprep.subr.mxu0 0.0
  %102 = vmatpush2.msra.mxu0 0.0
  %103 = vmatprep.subr.mxu0 0.0
  %104 = vmatpush2.msra.mxu0 0.0
  %105 = vmatprep.subr.mxu0 0.0
  %106 = vmatpush2.msra.mxu0 0.0
  %107 = vmatprep.subr.mxu0 0.0
  %108 = vmatpush2.msra.mxu0 0.0
  %109 = vmatprep.subr.mxu0 0.0
  %110 = vmatpush2.msra.mxu0 0.0
  %111 = vmatprep.subr.mxu0 0.0
  %112 = vmatpush2.msra.mxu0 0.0
  %113 = vmatprep.subr.mxu0 0.0
  %114 = vmatpush2.msra.mxu0 0.0
  %115 = vmatprep.mubr.f32.mxu0 0.0
  %116 = vmatmul.mubr.f32.gmra.mxu0 %v46
  %v117 = vpop.f32.mrf.mxu0
  %v118 = vadd.f32 %v37, %v117
  %v119 = vpop.f32.mrf.mxu0
  %120 = vmatprep.mubr.f32.mxu0 0.0
  %121 = vmatmul.mubr.f32.gmra.mxu0 %v49
  %v122 = vpop.f32.mrf.mxu0
  %v123 = vadd.f32 %v42, %v122
  %v124 = vpop.f32.mrf.mxu0
  %125 = vdwg.mxu0
  %v126 = vmul.f32 %v118, 0.5
  %v127 = vmul.f32 %v123, 0.5
  %v128 = vmul.f32 %v118, 0.70710677
  %v129 = vmul.f32 %v123, 0.70710677
  %v130 = verf.f32.pop %v128
  %v131 = verf.f32.pop %v129
  %v132 = vadd.f32 %v130, 1.0
  %v133 = vadd.f32 %v131, 1.0
  %v134 = vmul.f32 %v126, %v132
  %v135 = vmul.f32 %v127, %v133
  %v136 = vld [vmem:[%s2] sm:$0xff]
  %v137 = vld [vmem:[%s5] sm:$0xff]
  %139 = vset.pattern.permute.xlu0 0
  %140 = vperm.xlu0 %139, %v137
  %v141 = vpop.permute.xlu0 %140
  %vm143 = vcmask 130048
  %v145 = vsel %vm143, %v136, 0
  %147 = vmatprep.subr.mxu0 0.0
  %148 = vmatpush1.msra.mxu0 0.0
  %149 = vmatprep.subr.mxu0 0.0
  %150 = vmatpush1.msra.mxu0 0.0
  %151 = vmatprep.subr.mxu0 0.0
  %152 = vmatpush1.msra.mxu0 0.0
  %153 = vmatprep.subr.mxu0 0.0
  %154 = vmatpush1.msra.mxu0 0.0
  %155 = vmatprep.subr.mxu0 0.0
  %156 = vmatpush1.msra.mxu0 0.0
  %157 = vmatprep.subr.mxu0 0.0
  %158 = vmatpush1.msra.mxu0 0.0
  %159 = vmatprep.subr.mxu0 0.0
  %160 = vmatpush1.msra.mxu0 0.0
  %161 = vmatprep.subr.mxu0 0.0
  %162 = vmatpush1.msra.mxu0 0.0
  %163 = vmatprep.subr.mxu0 0.0
  %164 = vmatpush1.msra.mxu0 0.0
  %165 = vmatprep.subr.mxu0 0.0
  %166 = vmatpush1.msra.mxu0 0.0
  %167 = vmatprep.subr.mxu0 0.0
  %168 = vmatpush1.msra.mxu0 0.0
  %169 = vmatprep.subr.mxu0 0.0
  %170 = vmatpush1.msra.mxu0 0.0
  %171 = vmatprep.subr.mxu0 0.0
  %172 = vmatpush1.msra.mxu0 0.0
  %173 = vmatprep.subr.mxu0 0.0
  %174 = vmatpush1.msra.mxu0 0.0
  %175 = vmatprep.subr.mxu0 0.0
  %176 = vmatpush1.msra.mxu0 %v135
  %177 = vmatprep.subr.mxu0 0.0
  %178 = vmatpush1.msra.mxu0 %v134
  %179 = vmatprep.subr.mxu0 0.0
  %180 = vmatpush2.msra.mxu0 0.0
  %181 = vmatprep.subr.mxu0 0.0
  %182 = vmatpush2.msra.mxu0 0.0
  %183 = vmatprep.subr.mxu0 0.0
  %184 = vmatpush2.msra.mxu0 0.0
  %185 = vmatprep.subr.mxu0 0.0
  %186 = vmatpush2.msra.mxu0 0.0
  %187 = vmatprep.subr.mxu0 0.0
  %188 = vmatpush2.msra.mxu0 0.0
  %189 = vmatprep.subr.mxu0 0.0
  %190 = vmatpush2.msra.mxu0 0.0
  %191 = vmatprep.subr.mxu0 0.0
  %192 = vmatpush2.msra.mxu0 0.0
  %193 = vmatprep.subr.mxu0 0.0
  %194 = vmatpush2.msra.mxu0 0.0
  %195 = vmatprep.subr.mxu0 0.0
  %196 = vmatpush2.msra.mxu0 0.0
  %197 = vmatprep.subr.mxu0 0.0
  %198 = vmatpush2.msra.mxu0 0.0
  %199 = vmatprep.subr.mxu0 0.0
  %200 = vmatpush2.msra.mxu0 0.0
  %201 = vmatprep.subr.mxu0 0.0
  %202 = vmatpush2.msra.mxu0 0.0
  %203 = vmatprep.subr.mxu0 0.0
  %204 = vmatpush2.msra.mxu0 0.0
  %205 = vmatprep.subr.mxu0 0.0
  %206 = vmatpush2.msra.mxu0 0.0
  %207 = vmatprep.subr.mxu0 0.0
  %208 = vmatpush2.msra.mxu0 0.0
  %209 = vmatprep.subr.mxu0 0.0
  %210 = vmatpush2.msra.mxu0 0.0
  %211 = vmatprep.mubr.f32.mxu0 0.0
  %212 = vmatmul.mubr.f32.gmra.mxu0 %v145
  %v213 = vpop.f32.mrf.mxu0
  %v214 = vadd.f32 %v141, %v213
  %v215 = vpop.f32.mrf.mxu0
  %216 = vdwg.mxu0
  %v217 = vmul.f32 %v214, 0.5
  %v218 = vmul.f32 %v214, 0.70710677
  %v219 = verf.f32.pop %v218
  %v220 = vadd.f32 %v219, 1.0
  %v221 = vmul.f32 %v217, %v220
  %v222 = vld [vmem:[%s3] sm:$0xf]
  %v223 = vld [vmem:[%s6] sm:$0xf]
  %225 = vset.pattern.permute.xlu0 0
  %226 = vperm.xlu0 %225, %v223
  %v227 = vpop.permute.xlu0 %226
  %vm229 = vcmask 64512
  %v231 = vsel %vm229, %v222, 0
  %233 = vmatprep.subr.mxu0 0.0
  %234 = vmatpush1.msra.mxu0 0.0
  %235 = vmatprep.subr.mxu0 0.0
  %236 = vmatpush1.msra.mxu0 0.0
  %237 = vmatprep.subr.mxu0 0.0
  %238 = vmatpush1.msra.mxu0 0.0
  %239 = vmatprep.subr.mxu0 0.0
  %240 = vmatpush1.msra.mxu0 0.0
  %241 = vmatprep.subr.mxu0 0.0
  %242 = vmatpush1.msra.mxu0 0.0
  %243 = vmatprep.subr.mxu0 0.0
  %244 = vmatpush1.msra.mxu0 0.0
  %245 = vmatprep.subr.mxu0 0.0
  %246 = vmatpush1.msra.mxu0 0.0
  %247 = vmatprep.subr.mxu0 0.0
  %248 = vmatpush1.msra.mxu0 0.0
  %249 = vmatprep.subr.mxu0 0.0
  %250 = vmatpush1.msra.mxu0 0.0
  %251 = vmatprep.subr.mxu0 0.0
  %252 = vmatpush1.msra.mxu0 0.0
  %253 = vmatprep.subr.mxu0 0.0
  %254 = vmatpush1.msra.mxu0 0.0
  %255 = vmatprep.subr.mxu0 0.0
  %256 = vmatpush1.msra.mxu0 0.0
  %257 = vmatprep.subr.mxu0 0.0
  %258 = vmatpush1.msra.mxu0 0.0
  %259 = vmatprep.subr.mxu0 0.0
  %260 = vmatpush1.msra.mxu0 0.0
  %261 = vmatprep.subr.mxu0 0.0
  %262 = vmatpush1.msra.mxu0 0.0
  %263 = vmatprep.subr.mxu0 0.0
  %264 = vmatpush1.msra.mxu0 %v221
  %265 = vmatprep.subr.mxu0 0.0
  %266 = vmatpush2.msra.mxu0 0.0
  %267 = vmatprep.subr.mxu0 0.0
  %268 = vmatpush2.msra.mxu0 0.0
  %269 = vmatprep.subr.mxu0 0.0
  %270 = vmatpush2.msra.mxu0 0.0
  %271 = vmatprep.subr.mxu0 0.0
  %272 = vmatpush2.msra.mxu0 0.0
  %273 = vmatprep.subr.mxu0 0.0
  %274 = vmatpush2.msra.mxu0 0.0
  %275 = vmatprep.subr.mxu0 0.0
  %276 = vmatpush2.msra.mxu0 0.0
  %277 = vmatprep.subr.mxu0 0.0
  %278 = vmatpush2.msra.mxu0 0.0
  %279 = vmatprep.subr.mxu0 0.0
  %280 = vmatpush2.msra.mxu0 0.0
  %281 = vmatprep.subr.mxu0 0.0
  %282 = vmatpush2.msra.mxu0 0.0
  %283 = vmatprep.subr.mxu0 0.0
  %284 = vmatpush2.msra.mxu0 0.0
  %285 = vmatprep.subr.mxu0 0.0
  %286 = vmatpush2.msra.mxu0 0.0
  %287 = vmatprep.subr.mxu0 0.0
  %288 = vmatpush2.msra.mxu0 0.0
  %289 = vmatprep.subr.mxu0 0.0
  %290 = vmatpush2.msra.mxu0 0.0
  %291 = vmatprep.subr.mxu0 0.0
  %292 = vmatpush2.msra.mxu0 0.0
  %293 = vmatprep.subr.mxu0 0.0
  %294 = vmatpush2.msra.mxu0 0.0
  %295 = vmatprep.subr.mxu0 0.0
  %296 = vmatpush2.msra.mxu0 0.0
  %297 = vmatprep.mubr.f32.mxu0 0.0
  %298 = vmatmul.mubr.f32.gmra.mxu0 %v231
  %v299 = vpop.f32.mrf.mxu0
  %v300 = vadd.f32 %v227, %v299
  %v301 = vpop.f32.mrf.mxu0
  %302 = vdwg.mxu0
  %vm303 = vcmask 11264
  %304 = vst.msk [vmem:[%s7] sm:$0xf] %vm303, %v300
  // Predicated region
  $region30: #{tpu_custom_call.1} parent=0 // pred_check
    _
  $region31: #{tpu_custom_call.1} parent=0 // pred_check_branch
    %306 = sbr.rel (0) target = $region33
  $region32: #{tpu_custom_call.1} parent=0 // pred_region
    _
  $region33: #{tpu_custom_call.1} parent=0 // pred_fallthru
    _
  // Predicated region
  $region34: #{tpu_custom_call.1} parent=0 // pred_check
    _
  $region35: #{tpu_custom_call.1} parent=0 // pred_check_branch
    %308 = sbr.rel (0) target = $region37
  $region36: #{tpu_custom_call.1} parent=0 // pred_region
    _
  $region37: #{tpu_custom_call.1} parent=0 // pred_fallthru
    _

</llo_original>
